<compile_context>
chip_gen: v7x
topology: tpu7x:2x2x1
jax: 0.10.0
libtpu: 0.0.40
codegen_flags: <defaults>
</compile_context>

<pallas_src>
import math

import jax
import jax.numpy as jnp
from jax.experimental import pallas as pl
from jax.experimental.pallas import tpu as pltpu


def _round_up(x, m):
    return ((x + m - 1) // m) * m


def time_embedding_kernel(t_ref, freq_ref, w1s_ref, w1c_ref, b1_ref,
                          w2_ref, b2_ref, out_ref):
    # Transposed layout: batch on lanes.
    t = t_ref[...]          # (1, block_b) f32
    freq = freq_ref[...]    # (half_dim, 1) f32

    # emb_T = freq[:, None] * t[None, :]  -> (half_dim, block_b)
    emb = freq * t

    # Split-accumulate matmul instead of concat([sin, cos]) @ w1:
    #   h_T = w1_sin^T @ sin(emb_T) + w1_cos^T @ cos(emb_T) + b1^T
    h = (jnp.dot(w1s_ref[...], jnp.sin(emb),
                 preferred_element_type=jnp.float32)
         + jnp.dot(w1c_ref[...], jnp.cos(emb),
                   preferred_element_type=jnp.float32)
         + b1_ref[...])                      # (n_channels, block_b)

    # Swish: x * sigmoid(x); exp + approximate reciprocal both route to the
    # otherwise-idle EUP slot instead of the VALU divide of jax.nn.sigmoid.
    s = pl.reciprocal(1.0 + jnp.exp(-h), approx=True)
    h = h * s

    # Linear(n_channels -> n_channels):  out_T = w2^T @ h_T + b2^T
    out_ref[...] = (jnp.dot(w2_ref[...], h,
                            preferred_element_type=jnp.float32)
                    + b2_ref[...])           # (n_channels, block_b)


def time_embedding(t, freq, w1, b1, w2, b2, *, block_b=None):
    """t: (B,) f32 -> (B, n_channels) f32."""
    B = t.shape[0]
    half_dim = freq.shape[0]
    n_channels = w2.shape[1]
    assert w1.shape[0] == 2 * half_dim, (
        f"w1 input dim {w1.shape[0]} must equal 2 * len(freq) = {2 * half_dim}")
    assert w1.shape[1] == n_channels and w2.shape[0] == n_channels

    # Batch (lane-axis) tile: single 128-lane block for tiny batches; for
    # larger batches keep >= 2 blocks (shards across both TCs on v7x via the
    # "parallel" grid axis), capped at 8192 lanes per tile (double-buffered
    # t/out tiles stay ~2 MiB -- well under scoped VMEM on every generation).
    if block_b is None:
        B128 = _round_up(B, 128)
        if B128 <= 256:
            block_b = B128
        else:
            block_b = min(8192, _round_up((B128 + 1) // 2, 128))
    else:
        block_b = _round_up(max(int(block_b), 1), 128)

    B_pad = _round_up(B, block_b)
    num_blocks = B_pad // block_b
    assert B_pad % block_b == 0

    # t as a (1, B_pad) lane-major row; pad columns with zeros
    # (sin(0)=0, cos(0)=1 -> finite, sliced off at the end).
    t_row = t.astype(jnp.float32).reshape(1, B)
    if B_pad != B:
        t_row = jnp.pad(t_row, ((0, 0), (0, B_pad - B)))

    freq_col = freq.astype(jnp.float32).reshape(half_dim, 1)
    w1_sin_t = jnp.transpose(w1[:half_dim, :])    # (n_channels, half_dim)
    w1_cos_t = jnp.transpose(w1[half_dim:, :])    # (n_channels, half_dim)
    w2_t = jnp.transpose(w2)                      # (n_channels, n_channels)
    b1_col = b1.reshape(n_channels, 1)
    b2_col = b2.reshape(n_channels, 1)

    flops = B_pad * (4 * half_dim * n_channels      # two K=half_dim matmuls
                     + 2 * n_channels * n_channels  # second linear
                     + half_dim + 4 * n_channels)   # emb + swish/bias adds
    transcendentals = B_pad * (2 * half_dim + 2 * n_channels)
    bytes_accessed = 4 * (B_pad * (1 + n_channels)
                          + 2 * half_dim * n_channels
                          + n_channels * n_channels
                          + 2 * n_channels + half_dim)

    out_t = pl.pallas_call(
        time_embedding_kernel,
        out_shape=jax.ShapeDtypeStruct((n_channels, B_pad), jnp.float32),
        grid_spec=pltpu.PrefetchScalarGridSpec(
            num_scalar_prefetch=0,
            grid=(num_blocks,),
            in_specs=[
                pl.BlockSpec((1, block_b), lambda i: (0, i)),            # t
                pl.BlockSpec((half_dim, 1), lambda i: (0, 0)),           # freq
                pl.BlockSpec((n_channels, half_dim), lambda i: (0, 0)),  # w1_sin^T
                pl.BlockSpec((n_channels, half_dim), lambda i: (0, 0)),  # w1_cos^T
                pl.BlockSpec((n_channels, 1), lambda i: (0, 0)),         # b1
                pl.BlockSpec((n_channels, n_channels), lambda i: (0, 0)),  # w2^T
                pl.BlockSpec((n_channels, 1), lambda i: (0, 0)),         # b2
            ],
            out_specs=pl.BlockSpec((n_channels, block_b), lambda i: (0, i)),
        ),
        compiler_params=pltpu.CompilerParams(
            dimension_semantics=("parallel",)),
        cost_estimate=pl.CostEstimate(
            flops=flops,
            transcendentals=transcendentals,
            bytes_accessed=bytes_accessed),
    )(t_row, freq_col, w1_sin_t, w1_cos_t, b1_col, w2_t, b2_col)

    # Back to the module's (B, n_channels) contract.
    return out_t[:, :B].T


def make_params(key, n_channels):
    """Deterministic init matching the PyTorch module's shapes.

    nn.Linear default init: U(-1/sqrt(in), 1/sqrt(in)) for weight and bias.
    Weights are stored transposed relative to PyTorch, i.e. (in, out).
    """
    in1 = n_channels // 4
    k1, k2, k3, k4 = jax.random.split(key, 4)
    bound1 = 1.0 / math.sqrt(in1)
    bound2 = 1.0 / math.sqrt(n_channels)
    w1 = jax.random.uniform(k1, (in1, n_channels), jnp.float32,
                            -bound1, bound1)
    b1 = jax.random.uniform(k2, (n_channels,), jnp.float32, -bound1, bound1)
    w2 = jax.random.uniform(k3, (n_channels, n_channels), jnp.float32,
                            -bound2, bound2)
    b2 = jax.random.uniform(k4, (n_channels,), jnp.float32, -bound2, bound2)
    return w1, b1, w2, b2


def cal_freq(n_channels, base=10000):
    half_dim = n_channels // 8
    denom = max(half_dim - 1, 1)   # guard half_dim == 1 divide-by-zero
    emb = -math.log(base) / denom
    return jnp.exp(jnp.arange(half_dim, dtype=jnp.float32) * emb)


def reference_forward(t, freq, w1, b1, w2, b2):
    emb = t[:, None] * freq[None, :]
    t_emb = jnp.concatenate([jnp.sin(emb), jnp.cos(emb)], axis=1)
    h = t_emb @ w1 + b1
    h = h * jax.nn.sigmoid(h)
    return h @ w2 + b2


if __name__ == "__main__":
    n_channels = 32   # => half_dim = 4, MLP input dim = 8
    batch = 8

    key = jax.random.PRNGKey(0)
    k_t, k_params = jax.random.split(key)

    t = jax.random.uniform(k_t, (batch,), jnp.float32, 0.0, 1000.0)
    freq = cal_freq(n_channels)
    w1, b1, w2, b2 = make_params(k_params, n_channels)

    out = time_embedding(t, freq, w1, b1, w2, b2)
    out = jax.block_until_ready(out)

    ref = reference_forward(t, freq, w1, b1, w2, b2)
    assert out.shape == (batch, n_channels)
    # Tolerance reflects the EUP approximate-reciprocal swish path.
    assert jnp.allclose(out, ref, atol=2e-3, rtol=2e-3)

    # Also exercise the gridded path: 1024 -> two 512-lane blocks, which
    # shards across both TensorCores on v7x via the "parallel" grid axis.
    big_batch = 1024
    t_big = jax.random.uniform(jax.random.PRNGKey(1), (big_batch,),
                               jnp.float32, 0.0, 1000.0)
    out_big = jax.block_until_ready(
        time_embedding(t_big, freq, w1, b1, w2, b2))
    ref_big = reference_forward(t_big, freq, w1, b1, w2, b2)
    assert out_big.shape == (big_batch, n_channels)
    assert jnp.allclose(out_big, ref_big, atol=2e-3, rtol=2e-3)

    print("KERNEL_OK")
</pallas_src>

<mosaic_0001>
module attributes {stable_mosaic.version = 11 : i64} {
  func.func @time_embedding_kernel(%arg0: i32, %arg1: memref<1x128xf32, #tpu.memory_space<vmem>>, %arg2: memref<4x1xf32, #tpu.memory_space<vmem>>, %arg3: memref<32x4xf32, #tpu.memory_space<vmem>>, %arg4: memref<32x4xf32, #tpu.memory_space<vmem>>, %arg5: memref<32x1xf32, #tpu.memory_space<vmem>>, %arg6: memref<32x32xf32, #tpu.memory_space<vmem>>, %arg7: memref<32x1xf32, #tpu.memory_space<vmem>>, %arg8: memref<32x128xf32, #tpu.memory_space<vmem>>) attributes {dimension_semantics = [#tpu.dimension_semantics<parallel>], iteration_bounds = array<i64: 1>, scalar_prefetch = 0 : i64, scratch_operands = 0 : i64, tpu.core_type = #tpu.core_type<tc>, window_params = [{transform_indices = @transform_0, window_bounds = array<i64: 1, 128>}, {pipeline_mode = #tpu.pipeline_mode<synchronous>, transform_indices = @transform_1, window_bounds = array<i64: 4, 1>}, {pipeline_mode = #tpu.pipeline_mode<synchronous>, transform_indices = @transform_2, window_bounds = array<i64: 32, 4>}, {pipeline_mode = #tpu.pipeline_mode<synchronous>, transform_indices = @transform_3, window_bounds = array<i64: 32, 4>}, {pipeline_mode = #tpu.pipeline_mode<synchronous>, transform_indices = @transform_4, window_bounds = array<i64: 32, 1>}, {pipeline_mode = #tpu.pipeline_mode<synchronous>, transform_indices = @transform_5, window_bounds = array<i64: 32, 32>}, {pipeline_mode = #tpu.pipeline_mode<synchronous>, transform_indices = @transform_6, window_bounds = array<i64: 32, 1>}, {transform_indices = @transform_7, window_bounds = array<i64: 32, 128>}]} {
    %c0 = arith.constant 0 : index
    %c0_0 = arith.constant 0 : index
    %0 = vector.load %arg1[%c0, %c0_0] : memref<1x128xf32, #tpu.memory_space<vmem>>, vector<1x128xf32>
    %c0_1 = arith.constant 0 : index
    %c0_2 = arith.constant 0 : index
    %1 = vector.load %arg2[%c0_1, %c0_2] : memref<4x1xf32, #tpu.memory_space<vmem>>, vector<4x1xf32>
    %2 = vector.broadcast %1 : vector<4x1xf32> to vector<4x128xf32>
    %3 = vector.broadcast %0 : vector<1x128xf32> to vector<4x128xf32>
    %4 = arith.mulf %2, %3 : vector<4x128xf32>
    %c0_3 = arith.constant 0 : index
    %c0_4 = arith.constant 0 : index
    %5 = vector.load %arg3[%c0_3, %c0_4] : memref<32x4xf32, #tpu.memory_space<vmem>>, vector<32x4xf32>
    %6 = math.sin %4 : vector<4x128xf32>
    %cst = arith.constant dense<0.000000e+00> : vector<32x128xf32>
    %7 = tpu.matmul %5, %6, %cst {dimension_numbers = #tpu.dot_dimension_numbers<[1], [0], [0], [1], [0, 0, 1, 1], [], []>} : vector<32x4xf32>, vector<4x128xf32>, vector<32x128xf32> -> vector<32x128xf32>
    %c0_5 = arith.constant 0 : index
    %c0_6 = arith.constant 0 : index
    %8 = vector.load %arg4[%c0_5, %c0_6] : memref<32x4xf32, #tpu.memory_space<vmem>>, vector<32x4xf32>
    %9 = math.cos %4 : vector<4x128xf32>
    %cst_7 = arith.constant dense<0.000000e+00> : vector<32x128xf32>
    %10 = tpu.matmul %8, %9, %cst_7 {dimension_numbers = #tpu.dot_dimension_numbers<[1], [0], [0], [1], [0, 0, 1, 1], [], []>} : vector<32x4xf32>, vector<4x128xf32>, vector<32x128xf32> -> vector<32x128xf32>
    %11 = arith.addf %7, %10 : vector<32x128xf32>
    %c0_8 = arith.constant 0 : index
    %c0_9 = arith.constant 0 : index
    %12 = vector.load %arg5[%c0_8, %c0_9] : memref<32x1xf32, #tpu.memory_space<vmem>>, vector<32x1xf32>
    %13 = vector.broadcast %12 : vector<32x1xf32> to vector<32x128xf32>
    %14 = arith.addf %11, %13 : vector<32x128xf32>
    %cst_10 = arith.constant 0.000000e+00 : f32
    %15 = vector.broadcast %cst_10 : f32 to vector<32x128xf32>
    %16 = arith.subf %15, %14 : vector<32x128xf32>
    %17 = math.exp %16 : vector<32x128xf32>
    %cst_11 = arith.constant 1.000000e+00 : f32
    %18 = vector.broadcast %cst_11 : f32 to vector<32x128xf32>
    %19 = arith.addf %18, %17 : vector<32x128xf32>
    %20 = tpu.reciprocal %19 {approx = true} : vector<32x128xf32> -> vector<32x128xf32>
    %21 = arith.mulf %14, %20 : vector<32x128xf32>
    %c0_12 = arith.constant 0 : index
    %c0_13 = arith.constant 0 : index
    %22 = vector.load %arg6[%c0_12, %c0_13] : memref<32x32xf32, #tpu.memory_space<vmem>>, vector<32x32xf32>
    %cst_14 = arith.constant dense<0.000000e+00> : vector<32x128xf32>
    %23 = tpu.matmul %22, %21, %cst_14 {dimension_numbers = #tpu.dot_dimension_numbers<[1], [0], [0], [1], [0, 0, 1, 1], [], []>} : vector<32x32xf32>, vector<32x128xf32>, vector<32x128xf32> -> vector<32x128xf32>
    %c0_15 = arith.constant 0 : index
    %c0_16 = arith.constant 0 : index
    %24 = vector.load %arg7[%c0_15, %c0_16] : memref<32x1xf32, #tpu.memory_space<vmem>>, vector<32x1xf32>
    %25 = vector.broadcast %24 : vector<32x1xf32> to vector<32x128xf32>
    %26 = arith.addf %23, %25 : vector<32x128xf32>
    %c0_17 = arith.constant 0 : index
    %c0_18 = arith.constant 0 : index
    %27 = vector.load %arg8[%c0_17, %c0_18] : memref<32x128xf32, #tpu.memory_space<vmem>>, vector<32x128xf32>
    tpu.vector_store %arg8[%c0_17, %c0_18], %26 {strides = array<i32>} : memref<32x128xf32, #tpu.memory_space<vmem>>, vector<32x128xf32>,
    return
  }
  func.func @transform_0(%arg0: i32) -> (i32, i32) {
    %c0_i32 = arith.constant 0 : i32
    %c0_i32_0 = arith.constant 0 : i32
    return %c0_i32, %arg0 : i32, i32
  }
  func.func @transform_1(%arg0: i32) -> (i32, i32) {
    %c0_i32 = arith.constant 0 : i32
    %c0_i32_0 = arith.constant 0 : i32
    %c0_i32_1 = arith.constant 0 : i32
    return %c0_i32, %c0_i32_0 : i32, i32
  }
  func.func @transform_2(%arg0: i32) -> (i32, i32) {
    %c0_i32 = arith.constant 0 : i32
    %c0_i32_0 = arith.constant 0 : i32
    %c0_i32_1 = arith.constant 0 : i32
    return %c0_i32, %c0_i32_0 : i32, i32
  }
  func.func @transform_3(%arg0: i32) -> (i32, i32) {
    %c0_i32 = arith.constant 0 : i32
    %c0_i32_0 = arith.constant 0 : i32
    %c0_i32_1 = arith.constant 0 : i32
    return %c0_i32, %c0_i32_0 : i32, i32
  }
  func.func @transform_4(%arg0: i32) -> (i32, i32) {
    %c0_i32 = arith.constant 0 : i32
    %c0_i32_0 = arith.constant 0 : i32
    %c0_i32_1 = arith.constant 0 : i32
    return %c0_i32, %c0_i32_0 : i32, i32
  }
  func.func @transform_5(%arg0: i32) -> (i32, i32) {
    %c0_i32 = arith.constant 0 : i32
    %c0_i32_0 = arith.constant 0 : i32
    %c0_i32_1 = arith.constant 0 : i32
    return %c0_i32, %c0_i32_0 : i32, i32
  }
  func.func @transform_6(%arg0: i32) -> (i32, i32) {
    %c0_i32 = arith.constant 0 : i32
    %c0_i32_0 = arith.constant 0 : i32
    %c0_i32_1 = arith.constant 0 : i32
    return %c0_i32, %c0_i32_0 : i32, i32
  }
  func.func @transform_7(%arg0: i32) -> (i32, i32) {
    %c0_i32 = arith.constant 0 : i32
    %c0_i32_0 = arith.constant 0 : i32
    return %c0_i32, %arg0 : i32, i32
  }
}

</mosaic_0001>

<llo_original>
// kernel: tpu_custom_call.1
$region0: #{tpu_custom_call.1}
  #allocation0 [shape = 'u32[]', space=smem, size = 0x4, offset = 0x4, fixed_abs, tag = 'smem constant byte address 0x4 - core index']
  #allocation1 [shape = 'u32[144,128]{1,0:T(1,128)}', space=vmem, size = 0x12000, scoped, tag = 'internal scratch']
  %s0 = inlined_call_operand.vmem [shape: f32[1,128], index: 0, kind: input, shape index: {}]
  %s1 = inlined_call_operand.vmem [shape: f32[4,1], index: 1, kind: input, shape index: {}]
  %s2 = inlined_call_operand.vmem [shape: f32[32,4], index: 2, kind: input, shape index: {}]
  %s3 = inlined_call_operand.vmem [shape: f32[32,4], index: 3, kind: input, shape index: {}]
  %s4 = inlined_call_operand.vmem [shape: f32[32,1], index: 4, kind: input, shape index: {}]
  %s5 = inlined_call_operand.vmem [shape: f32[32,32], index: 5, kind: input, shape index: {}]
  %s6 = inlined_call_operand.vmem [shape: f32[32,1], index: 6, kind: input, shape index: {}]
  %s7 = inlined_call_operand.hbm [shape: f32[32,128], index: 7, kind: output, shape index: {}]
  %s8 = sld [smem:[#allocation0]]
  $region38: #{tpu_custom_call.1} parent=0
    _
  %s10 = ssub.s32 1, %s8
  %s11 = scalar_select 0, %s10, %s8
  $region1: #{tpu_custom_call.1} parent=0
    #allocation2 [shape = 'u8[16384]{0}', space=vmem, size = 0x4000, scoped, tag = 'output window, operand 0, single buffered']
    #allocation3 [shape = 's32[1]{0}', space=sflag, size = 0x4, scoped, tag = 'scoped memory for tpu_custom_call.1']
    %12 = vsyncpa [#allocation3], 0
    // Predicated region
    $region2: #{tpu_custom_call.1} parent=1 // pred_check
      _
    $region3: #{tpu_custom_call.1} parent=1 // pred_check_branch
      %14 = sbr.rel (0) target = $region5
    $region4: #{tpu_custom_call.1} parent=1 // pred_region
      _
    $region5: #{tpu_custom_call.1} parent=1 // pred_fallthru
      _
    // Predicated region
    $region6: #{tpu_custom_call.1} parent=1 // pred_check
      _
    $region7: #{tpu_custom_call.1} parent=1 // pred_check_branch
      %16 = sbr.rel (0) target = $region9
    $region8: #{tpu_custom_call.1} parent=1 // pred_region
      _
    $region9: #{tpu_custom_call.1} parent=1 // pred_fallthru
      _
    // Predicated region
    $region10: #{tpu_custom_call.1} parent=1 // pred_check
      _
    $region11: #{tpu_custom_call.1} parent=1 // pred_check_branch
      %18 = sbr.rel (0) target = $region13
    $region12: #{tpu_custom_call.1} parent=1 // pred_region
      _
    $region13: #{tpu_custom_call.1} parent=1 // pred_fallthru
      _
    // Predicated region
    $region14: #{tpu_custom_call.1} parent=1 // pred_check
      _
    $region15: #{tpu_custom_call.1} parent=1 // pred_check_branch
      %20 = sbr.rel (0) target = $region17
    $region16: #{tpu_custom_call.1} parent=1 // pred_region
      _
    $region17: #{tpu_custom_call.1} parent=1 // pred_fallthru
      _
    // Predicated region
    $region18: #{tpu_custom_call.1} parent=1 // pred_check
      _
    $region19: #{tpu_custom_call.1} parent=1 // pred_check_branch
      %22 = sbr.rel (0) target = $region21
    $region20: #{tpu_custom_call.1} parent=1 // pred_region
      _
    $region21: #{tpu_custom_call.1} parent=1 // pred_fallthru
      _
    // Predicated region
    $region22: #{tpu_custom_call.1} parent=1 // pred_check
      _
    $region23: #{tpu_custom_call.1} parent=1 // pred_check_branch
      %24 = sbr.rel (0) target = $region25
    $region24: #{tpu_custom_call.1} parent=1 // pred_region
      _
    $region25: #{tpu_custom_call.1} parent=1 // pred_fallthru
      _
    // Predicated region
    $region26: #{tpu_custom_call.1} parent=1 // pred_check
      _
    $region27: #{tpu_custom_call.1} parent=1 // pred_check_branch
      %26 = sbr.rel (0) target = $region29
    $region28: #{tpu_custom_call.1} parent=1 // pred_region
      _
    $region29: #{tpu_custom_call.1} parent=1 // pred_fallthru
      _
    %v27 = vld [vmem:[%s0] sm:$0x1]
    %v28 = vld [vmem:[%s1] sm:$0xf]
    %30 = vset.pattern.permute.xlu0 0
    %31 = vperm.xlu0 %30, %v28
    %v32 = vpop.permute.xlu0 %31
    %v35 = vlaneseq
    %v36 = vshrl.u32 %v35, 7
    %v37 = vsub.s32 0, %v36
    %v38 = vrot.slane %v27, %v37
    %v40 = vmul.f32 %v32, %v38
    %v41 = vld [vmem:[%s2] sm:$0xff]
    %v42 = vld [vmem:[%s2 + $0x8] sm:$0xff]
    %v43 = vld [vmem:[%s2 + $0x10] sm:$0xff]
    %v44 = vld [vmem:[%s2 + $0x18] sm:$0xff]
    %v45 = vand.u32 2147483647, %v40
    %vm46 = vcmp.le.f32.partialorder %v45, 0.7853982
    %vm47 = vcmp.lt.s32.totalorder %v40, 0
    %v48 = vand.u32 %v40, 2139095040
    %v49 = vshrl.u32 %v48, 23
    %v50 = vsub.s32 %v49, 127
    %v51 = vand.u32 2147483647, %v40
    %v52 = vand.u32 %v51, 8388607
    %v53 = vor.u32 %v52, 8388608
    %v54 = vsub.s32 0, %v53
    %v55 = vadd.s32 %v50, 1
    %vm56 = vcmp.gt.s32.totalorder %v55, 0
    %v57 = vsel %vm56, %v55, 0
    %v58 = vshrl.u32 %v57, 5
    %v59 = vand.u32 %v57, 31
    %v60 = vsub.s32 32, %v59
    %v61 = vshrl.u32 683565275, %v60
    %v62 = vshll.u32 683565275, %v59
    %v63 = vshrl.u32 2475754826, %v60
    %v64 = vor.u32 %v62, %v63
    %v65 = vshll.u32 2475754826, %v59
    %v66 = vshrl.u32 2131351028, %v60
    %v67 = vor.u32 %v65, %v66
    %v68 = vshll.u32 2131351028, %v59
    %v69 = vshrl.u32 2102212464, %v60
    %v70 = vor.u32 %v68, %v69
    %v71 = vshll.u32 2102212464, %v59
    %v72 = vshrl.u32 920167782, %v60
    %v73 = vor.u32 %v71, %v72
    %v74 = vshll.u32 920167782, %v59
    %v75 = vshrl.u32 1326507024, %v60
    %v76 = vor.u32 %v74, %v75
    %vm77 = vcmp.lt.s32.totalorder %v58, 1
    %vm78 = vcmp.lt.s32.totalorder %v58, 2
    %vm79 = vcmp.lt.s32.totalorder %v58, 3
    %vm80 = vcmp.lt.s32.totalorder %v58, 4
    %v81 = vsel %vm77, %v61, %v64
    %v82 = vsel %vm80, %v70, 2102212464
    %v83 = vsel %vm79, %v67, %v82
    %v84 = vsel %vm78, %v81, %v83
    %v85 = vsel %vm77, %v64, %v67
    %v86 = vsel %vm80, %v73, 920167782
    %v87 = vsel %vm79, %v70, %v86
    %v88 = vsel %vm78, %v85, %v87
    %v89 = vsel %vm77, %v67, %v70
    %v90 = vsel %vm80, %v76, 1326507024
    %v91 = vsel %vm79, %v73, %v90
    %v92 = vsel %vm78, %v89, %v91
    %v93 = vshll.u32 %v53, 8
    %v94 = vmul.u32.u64.compose %v93, %v92
    %v95 = vextract.low.u32 %v94
    %v96 = vextract.high.u32 %v94
    %v97 = vmul.u32.u64.compose %v93, %v88
    %v98 = vextract.low.u32 %v97
    %v99 = vextract.high.u32 %v97
    %v100 = vmul.u32 %v93, %v84
    %v101 = vadd.s32 %v96, %v98
    %vm102 = vc.u32 %v96, %v98
    %v103 = vadd.s32 %v99, 1
    %v104 = vsel %vm102, %v103, %v99
    %v105 = vadd.s32 %v100, %v104
    %v106 = vadd.s32 %v105, 536870912
    %v107 = vshrl.u32 %v106, 30
    %v108 = vshll.u32 %v107, 30
    %v109 = vsub.s32 %v105, %v108
    %vm110 = vcmp.lt.s32.totalorder %v109, 0
    %v111 = vsub.s32 0, %v109
    %v112 = vsel %vm110, %v111, %v109
    %v113 = vclz %v112
    %v114 = vsub.s32 %v113, 2
    %vm115 = vcmp.gt.s32.totalorder 0, %v114
    %v116 = vsel %vm115, 0, %v114
    %v117 = vsub.s32 32, %v116
    %v118 = vshll.u32 %v109, %v116
    %v119 = vshrl.u32 %v101, %v117
    %v120 = vor.u32 %v118, %v119
    %v121 = vsub.s32 4294967266, %v116
    %v122 = vadd.s32 %v121, 127
    %v123 = vshll.u32 %v122, 23
    %v124 = vor.u32 4788187, %v123
    %v125 = vand.u32 2147483647, %v124
    %v127 = vcvt.s32.f32 %v120
    %v128 = vmul.f32 %v127, %v125
    %v129 = vxor.u32 %v128, 2147483648
    %v130 = vsel %vm47, %v129, %v128
    %v131 = vsub.s32 4, %v107
    %v132 = vsel %vm47, %v131, %v107
    %v133 = vsel %vm46, %v40, %v130
    %v134 = vsel %vm46, 0, %v132
    %v135 = vcosq.f32.pop %v133
    %v136 = vsinq.f32.pop %v133
    %vm137 = vweird.f32 %v40
    %v138 = vadd.s32 %v134, 3
    %v139 = vand.u32 %v138, 3
    %vm140 = vcmp.lt.s32.totalorder %v139, 2
    %vm141 = vcmp.eq.s32.totalorder %v139, 0
    %v142 = vxor.u32 %v136, 2147483648
    %v143 = vsel %vm141, %v135, %v142
    %vm144 = vcmp.eq.s32.totalorder %v139, 2
    %v145 = vxor.u32 %v135, 2147483648
    %v146 = vsel %vm144, %v145, %v136
    %v147 = vsel %vm140, %v143, %v146
    %v148 = vsel %vm137, nan, %v147
    %v149 = vld [vmem:[%s3] sm:$0xff]
    %v150 = vld [vmem:[%s3 + $0x8] sm:$0xff]
    %v151 = vld [vmem:[%s3 + $0x10] sm:$0xff]
    %v152 = vld [vmem:[%s3 + $0x18] sm:$0xff]
    %v153 = vand.u32 2147483647, %v40
    %vm154 = vcmp.le.f32.partialorder %v153, 0.7853982
    %vm155 = vcmp.lt.s32.totalorder %v40, 0
    %v156 = vand.u32 %v40, 2139095040
    %v157 = vshrl.u32 %v156, 23
    %v158 = vsub.s32 %v157, 127
    %v159 = vand.u32 2147483647, %v40
    %v160 = vand.u32 %v159, 8388607
    %v161 = vor.u32 %v160, 8388608
    %v162 = vsub.s32 0, %v161
    %v163 = vadd.s32 %v158, 1
    %vm164 = vcmp.gt.s32.totalorder %v163, 0
    %v165 = vsel %vm164, %v163, 0
    %v166 = vshrl.u32 %v165, 5
    %v167 = vand.u32 %v165, 31
    %v168 = vsub.s32 32, %v167
    %v169 = vshrl.u32 683565275, %v168
    %v170 = vshll.u32 683565275, %v167
    %v171 = vshrl.u32 2475754826, %v168
    %v172 = vor.u32 %v170, %v171
    %v173 = vshll.u32 2475754826, %v167
    %v174 = vshrl.u32 2131351028, %v168
    %v175 = vor.u32 %v173, %v174
    %v176 = vshll.u32 2131351028, %v167
    %v177 = vshrl.u32 2102212464, %v168
    %v178 = vor.u32 %v176, %v177
    %v179 = vshll.u32 2102212464, %v167
    %v180 = vshrl.u32 920167782, %v168
    %v181 = vor.u32 %v179, %v180
    %v182 = vshll.u32 920167782, %v167
    %v183 = vshrl.u32 1326507024, %v168
    %v184 = vor.u32 %v182, %v183
    %vm185 = vcmp.lt.s32.totalorder %v166, 1
    %vm186 = vcmp.lt.s32.totalorder %v166, 2
    %vm187 = vcmp.lt.s32.totalorder %v166, 3
    %vm188 = vcmp.lt.s32.totalorder %v166, 4
    %v189 = vsel %vm185, %v169, %v172
    %v190 = vsel %vm188, %v178, 2102212464
    %v191 = vsel %vm187, %v175, %v190
    %v192 = vsel %vm186, %v189, %v191
    %v193 = vsel %vm185, %v172, %v175
    %v194 = vsel %vm188, %v181, 920167782
    %v195 = vsel %vm187, %v178, %v194
    %v196 = vsel %vm186, %v193, %v195
    %v197 = vsel %vm185, %v175, %v178
    %v198 = vsel %vm188, %v184, 1326507024
    %v199 = vsel %vm187, %v181, %v198
    %v200 = vsel %vm186, %v197, %v199
    %v201 = vshll.u32 %v161, 8
    %v202 = vmul.u32.u64.compose %v201, %v200
    %v203 = vextract.low.u32 %v202
    %v204 = vextract.high.u32 %v202
    %v205 = vmul.u32.u64.compose %v201, %v196
    %v206 = vextract.low.u32 %v205
    %v207 = vextract.high.u32 %v205
    %v208 = vmul.u32 %v201, %v192
    %v209 = vadd.s32 %v204, %v206
    %vm210 = vc.u32 %v204, %v206
    %v211 = vadd.s32 %v207, 1
    %v212 = vsel %vm210, %v211, %v207
    %v213 = vadd.s32 %v208, %v212
    %v214 = vadd.s32 %v213, 536870912
    %v215 = vshrl.u32 %v214, 30
    %v216 = vshll.u32 %v215, 30
    %v217 = vsub.s32 %v213, %v216
    %vm218 = vcmp.lt.s32.totalorder %v217, 0
    %v219 = vsub.s32 0, %v217
    %v220 = vsel %vm218, %v219, %v217
    %v221 = vclz %v220
    %v222 = vsub.s32 %v221, 2
    %vm223 = vcmp.gt.s32.totalorder 0, %v222
    %v224 = vsel %vm223, 0, %v222
    %v225 = vsub.s32 32, %v224
    %v226 = vshll.u32 %v217, %v224
    %v227 = vshrl.u32 %v209, %v225
    %v228 = vor.u32 %v226, %v227
    %v229 = vsub.s32 4294967266, %v224
    %v230 = vadd.s32 %v229, 127
    %v231 = vshll.u32 %v230, 23
    %v232 = vor.u32 4788187, %v231
    %v233 = vand.u32 2147483647, %v232
    %v235 = vcvt.s32.f32 %v228
    %v236 = vmul.f32 %v235, %v233
    %v237 = vxor.u32 %v236, 2147483648
    %v238 = vsel %vm155, %v237, %v236
    %v239 = vsub.s32 4, %v215
    %v240 = vsel %vm155, %v239, %v215
    %v241 = vsel %vm154, %v40, %v238
    %v242 = vsel %vm154, 0, %v240
    %v243 = vcosq.f32.pop %v241
    %v244 = vsinq.f32.pop %v241
    %vm245 = vweird.f32 %v40
    %v246 = vand.u32 %v242, 3
    %vm247 = vcmp.lt.s32.totalorder %v246, 2
    %vm248 = vcmp.eq.s32.totalorder %v246, 0
    %v249 = vxor.u32 %v244, 2147483648
    %v250 = vsel %vm248, %v243, %v249
    %vm251 = vcmp.eq.s32.totalorder %v246, 2
    %v252 = vxor.u32 %v243, 2147483648
    %v253 = vsel %vm251, %v252, %v244
    %v254 = vsel %vm247, %v250, %v253
    %v255 = vsel %vm245, nan, %v254
    %vm256 = vcmask 31744
    %v258 = vsel %vm256, %v149, 0
    %v261 = vsel %vm256, %v150, 0
    %v264 = vsel %vm256, %v151, 0
    %v267 = vsel %vm256, %v152, 0
    %vm269 = vcmask 1043456
    %v271 = vsel %vm269, %v255, 0
    %273 = vmatprep.subr.mxu0 0.0
    %274 = vmatpush1.msra.mxu0 %v271
    %275 = vmatprep.subr.mxu0 0.0
    %276 = vmatpush1.msra.mxu0 0.0
    %277 = vmatprep.subr.mxu0 0.0
    %278 = vmatpush1.msra.mxu0 0.0
    %279 = vmatprep.subr.mxu0 0.0
    %280 = vmatpush1.msra.mxu0 0.0
    %281 = vmatprep.subr.mxu0 0.0
    %282 = vmatpush1.msra.mxu0 0.0
    %283 = vmatprep.subr.mxu0 0.0
    %284 = vmatpush1.msra.mxu0 0.0
    %285 = vmatprep.subr.mxu0 0.0
    %286 = vmatpush1.msra.mxu0 0.0
    %287 = vmatprep.subr.mxu0 0.0
    %288 = vmatpush1.msra.mxu0 0.0
    %289 = vmatprep.subr.mxu0 0.0
    %290 = vmatpush1.msra.mxu0 0.0
    %291 = vmatprep.subr.mxu0 0.0
    %292 = vmatpush1.msra.mxu0 0.0
    %293 = vmatprep.subr.mxu0 0.0
    %294 = vmatpush1.msra.mxu0 0.0
    %295 = vmatprep.subr.mxu0 0.0
    %296 = vmatpush1.msra.mxu0 0.0
    %297 = vmatprep.subr.mxu0 0.0
    %298 = vmatpush1.msra.mxu0 0.0
    %299 = vmatprep.subr.mxu0 0.0
    %300 = vmatpush1.msra.mxu0 0.0
    %301 = vmatprep.subr.mxu0 0.0
    %302 = vmatpush1.msra.mxu0 0.0
    %303 = vmatprep.subr.mxu0 0.0
    %304 = vmatpush1.msra.mxu0 0.0
    %305 = vmatprep.subr.mxu0 0.0
    %306 = vmatpush1.msra.mxu0 0.0
    %307 = vmatprep.subr.mxu0 0.0
    %308 = vmatpush1.msra.mxu0 0.0
    %309 = vmatprep.subr.mxu0 0.0
    %310 = vmatpush1.msra.mxu0 0.0
    %311 = vmatprep.subr.mxu0 0.0
    %312 = vmatpush1.msra.mxu0 0.0
    %313 = vmatprep.subr.mxu0 0.0
    %314 = vmatpush1.msra.mxu0 0.0
    %315 = vmatprep.subr.mxu0 0.0
    %316 = vmatpush1.msra.mxu0 0.0
    %317 = vmatprep.subr.mxu0 0.0
    %318 = vmatpush1.msra.mxu0 0.0
    %319 = vmatprep.subr.mxu0 0.0
    %320 = vmatpush1.msra.mxu0 0.0
    %321 = vmatprep.subr.mxu0 0.0
    %322 = vmatpush1.msra.mxu0 0.0
    %323 = vmatprep.subr.mxu0 0.0
    %324 = vmatpush1.msra.mxu0 0.0
    %325 = vmatprep.subr.mxu0 0.0
    %326 = vmatpush1.msra.mxu0 0.0
    %327 = vmatprep.subr.mxu0 0.0
    %328 = vmatpush1.msra.mxu0 0.0
    %329 = vmatprep.subr.mxu0 0.0
    %330 = vmatpush1.msra.mxu0 0.0
    %331 = vmatprep.subr.mxu0 0.0
    %332 = vmatpush1.msra.mxu0 0.0
    %333 = vmatprep.subr.mxu0 0.0
    %334 = vmatpush1.msra.mxu0 0.0
    %335 = vmatprep.subr.mxu0 0.0
    %336 = vmatpush1.msra.mxu0 0.0
    %337 = vmatprep.mubr.f32.mxu0 0.0
    %338 = vmatmul.mubr.f32.gmra.mrb[0].mxu0 %v258
    %v339 = vpop.f32.mrb[0].mxu0
    %v340 = vadd.f32 0.0, %v339
    %v341 = vpop.f32.mrb[0].mxu0
    %342 = vmatprep.mubr.f32.mxu0 0.0
    %343 = vmatmul.mubr.f32.gmra.mrb[0].mxu0 %v261
    %v344 = vpop.f32.mrb[0].mxu0
    %v345 = vadd.f32 0.0, %v344
    %v346 = vpop.f32.mrb[0].mxu0
    %347 = vmatprep.mubr.f32.mxu0 0.0
    %348 = vmatmul.mubr.f32.gmra.mrb[0].mxu0 %v264
    %v349 = vpop.f32.mrb[0].mxu0
    %v350 = vadd.f32 0.0, %v349
    %v351 = vpop.f32.mrb[0].mxu0
    %352 = vmatprep.mubr.f32.mxu0 0.0
    %353 = vmatmul.mubr.f32.gmra.mrb[0].mxu0 %v267
    %v354 = vpop.f32.mrb[0].mxu0
    %v355 = vadd.f32 0.0, %v354
    %v356 = vpop.f32.mrb[0].mxu0
    %357 = vdwg.mxu0
    %v359 = vsel %vm256, %v41, 0
    %v362 = vsel %vm256, %v42, 0
    %v365 = vsel %vm256, %v43, 0
    %v368 = vsel %vm256, %v44, 0
    %v371 = vsel %vm269, %v148, 0
    %373 = vmatprep.subr.mxu0 0.0
    %374 = vmatpush1.msra.mxu0 %v371
    %375 = vmatprep.subr.mxu0 0.0
    %376 = vmatpush1.msra.mxu0 0.0
    %377 = vmatprep.subr.mxu0 0.0
    %378 = vmatpush1.msra.mxu0 0.0
    %379 = vmatprep.subr.mxu0 0.0
    %380 = vmatpush1.msra.mxu0 0.0
    %381 = vmatprep.subr.mxu0 0.0
    %382 = vmatpush1.msra.mxu0 0.0
    %383 = vmatprep.subr.mxu0 0.0
    %384 = vmatpush1.msra.mxu0 0.0
    %385 = vmatprep.subr.mxu0 0.0
    %386 = vmatpush1.msra.mxu0 0.0
    %387 = vmatprep.subr.mxu0 0.0
    %388 = vmatpush1.msra.mxu0 0.0
    %389 = vmatprep.subr.mxu0 0.0
    %390 = vmatpush1.msra.mxu0 0.0
    %391 = vmatprep.subr.mxu0 0.0
    %392 = vmatpush1.msra.mxu0 0.0
    %393 = vmatprep.subr.mxu0 0.0
    %394 = vmatpush1.msra.mxu0 0.0
    %395 = vmatprep.subr.mxu0 0.0
    %396 = vmatpush1.msra.mxu0 0.0
    %397 = vmatprep.subr.mxu0 0.0
    %398 = vmatpush1.msra.mxu0 0.0
    %399 = vmatprep.subr.mxu0 0.0
    %400 = vmatpush1.msra.mxu0 0.0
    %401 = vmatprep.subr.mxu0 0.0
    %402 = vmatpush1.msra.mxu0 0.0
    %403 = vmatprep.subr.mxu0 0.0
    %404 = vmatpush1.msra.mxu0 0.0
    %405 = vmatprep.subr.mxu0 0.0
    %406 = vmatpush1.msra.mxu0 0.0
    %407 = vmatprep.subr.mxu0 0.0
    %408 = vmatpush1.msra.mxu0 0.0
    %409 = vmatprep.subr.mxu0 0.0
    %410 = vmatpush1.msra.mxu0 0.0
    %411 = vmatprep.subr.mxu0 0.0
    %412 = vmatpush1.msra.mxu0 0.0
    %413 = vmatprep.subr.mxu0 0.0
    %414 = vmatpush1.msra.mxu0 0.0
    %415 = vmatprep.subr.mxu0 0.0
    %416 = vmatpush1.msra.mxu0 0.0
    %417 = vmatprep.subr.mxu0 0.0
    %418 = vmatpush1.msra.mxu0 0.0
    %419 = vmatprep.subr.mxu0 0.0
    %420 = vmatpush1.msra.mxu0 0.0
    %421 = vmatprep.subr.mxu0 0.0
    %422 = vmatpush1.msra.mxu0 0.0
    %423 = vmatprep.subr.mxu0 0.0
    %424 = vmatpush1.msra.mxu0 0.0
    %425 = vmatprep.subr.mxu0 0.0
    %426 = vmatpush1.msra.mxu0 0.0
    %427 = vmatprep.subr.mxu0 0.0
    %428 = vmatpush1.msra.mxu0 0.0
    %429 = vmatprep.subr.mxu0 0.0
    %430 = vmatpush1.msra.mxu0 0.0
    %431 = vmatprep.subr.mxu0 0.0
    %432 = vmatpush1.msra.mxu0 0.0
    %433 = vmatprep.subr.mxu0 0.0
    %434 = vmatpush1.msra.mxu0 0.0
    %435 = vmatprep.subr.mxu0 0.0
    %436 = vmatpush1.msra.mxu0 0.0
    %437 = vmatprep.mubr.f32.mxu0 0.0
    %438 = vmatmul.mubr.f32.gmra.mrb[0].mxu0 %v359
    %v439 = vpop.f32.mrb[0].mxu0
    %v440 = vadd.f32 %v340, %v439
    %v441 = vpop.f32.mrb[0].mxu0
    %442 = vmatprep.mubr.f32.mxu0 0.0
    %443 = vmatmul.mubr.f32.gmra.mrb[0].mxu0 %v362
    %v444 = vpop.f32.mrb[0].mxu0
    %v445 = vadd.f32 %v345, %v444
    %v446 = vpop.f32.mrb[0].mxu0
    %447 = vmatprep.mubr.f32.mxu0 0.0
    %448 = vmatmul.mubr.f32.gmra.mrb[0].mxu0 %v365
    %v449 = vpop.f32.mrb[0].mxu0
    %v450 = vadd.f32 %v350, %v449
    %v451 = vpop.f32.mrb[0].mxu0
    %452 = vmatprep.mubr.f32.mxu0 0.0
    %453 = vmatmul.mubr.f32.gmra.mrb[0].mxu0 %v368
    %v454 = vpop.f32.mrb[0].mxu0
    %v455 = vadd.f32 %v355, %v454
    %v456 = vpop.f32.mrb[0].mxu0
    %457 = vdwg.mxu0
    %v458 = vld [vmem:[%s4] sm:$0xff]
    %v459 = vld [vmem:[%s4 + $0x8] sm:$0xff]
    %v460 = vld [vmem:[%s4 + $0x10] sm:$0xff]
    %v461 = vld [vmem:[%s4 + $0x18] sm:$0xff]
    %463 = vset.pattern.permute.xlu0 0
    %464 = vperm.xlu0 %463, %v458
    %v465 = vpop.permute.xlu0 %464
    %468 = vset.pattern.permute.xlu0 0
    %469 = vperm.xlu0 %468, %v459
    %v470 = vpop.permute.xlu0 %469
    %473 = vset.pattern.permute.xlu0 0
    %474 = vperm.xlu0 %473, %v460
    %v475 = vpop.permute.xlu0 %474
    %478 = vset.pattern.permute.xlu0 0
    %479 = vperm.xlu0 %478, %v461
    %v480 = vpop.permute.xlu0 %479
    %v482 = vadd.f32 %v440, %v465
    %v483 = vadd.f32 %v445, %v470
    %v484 = vadd.f32 %v450, %v475
    %v485 = vadd.f32 %v455, %v480
    %v486 = vsub.f32 0.0, %v482
    %v487 = vsub.f32 0.0, %v483
    %v488 = vsub.f32 0.0, %v484
    %v489 = vsub.f32 0.0, %v485
    %v490 = vmul.f32 %v486, 1.442695
    %v491 = vpow.pop %v490
    %v492 = vmul.f32 %v487, 1.442695
    %v493 = vpow.pop %v492
    %v494 = vmul.f32 %v488, 1.442695
    %v495 = vpow.pop %v494
    %v496 = vmul.f32 %v489, 1.442695
    %v497 = vpow.pop %v496
    %v498 = vadd.f32 %v491, 1.0
    %v499 = vadd.f32 %v493, 1.0
    %v500 = vadd.f32 %v495, 1.0
    %v501 = vadd.f32 %v497, 1.0
    %v502 = vrcp.pop %v498
    %v503 = vrcp.pop %v499
    %v504 = vrcp.pop %v500
    %v505 = vrcp.pop %v501
    %v506 = vmul.f32 %v482, %v502
    %v507 = vmul.f32 %v483, %v503
    %v508 = vmul.f32 %v484, %v504
    %v509 = vmul.f32 %v485, %v505
    %v510 = vld [vmem:[%s5] sm:$0xff]
    %v511 = vld [vmem:[%s5 + $0x8] sm:$0xff]
    %v512 = vld [vmem:[%s5 + $0x10] sm:$0xff]
    %v513 = vld [vmem:[%s5 + $0x18] sm:$0xff]
    %v514 = vld [vmem:[%s6] sm:$0xff]
    %v515 = vld [vmem:[%s6 + $0x8] sm:$0xff]
    %v516 = vld [vmem:[%s6 + $0x10] sm:$0xff]
    %v517 = vld [vmem:[%s6 + $0x18] sm:$0xff]
    %519 = vset.pattern.permute.xlu0 0
    %520 = vperm.xlu0 %519, %v514
    %v521 = vpop.permute.xlu0 %520
    %524 = vset.pattern.permute.xlu0 0
    %525 = vperm.xlu0 %524, %v515
    %v526 = vpop.permute.xlu0 %525
    %529 = vset.pattern.permute.xlu0 0
    %530 = vperm.xlu0 %529, %v516
    %v531 = vpop.permute.xlu0 %530
    %534 = vset.pattern.permute.xlu0 0
    %535 = vperm.xlu0 %534, %v517
    %v536 = vpop.permute.xlu0 %535
    %vm538 = vcmask 261120
    %v540 = vsel %vm538, %v510, 0
    %v543 = vsel %vm538, %v511, 0
    %v546 = vsel %vm538, %v512, 0
    %v549 = vsel %vm538, %v513, 0
    %551 = vmatprep.subr.mxu0 0.0
    %552 = vmatpush1.msra.mxu0 %v506
    %553 = vmatprep.subr.mxu0 0.0
    %554 = vmatpush1.msra.mxu0 %v507
    %555 = vmatprep.subr.mxu0 0.0
    %556 = vmatpush1.msra.mxu0 %v508
    %557 = vmatprep.subr.mxu0 0.0
    %558 = vmatpush1.msra.mxu0 %v509
    %559 = vmatprep.subr.mxu0 0.0
    %560 = vmatpush1.msra.mxu0 0.0
    %561 = vmatprep.subr.mxu0 0.0
    %562 = vmatpush1.msra.mxu0 0.0
    %563 = vmatprep.subr.mxu0 0.0
    %564 = vmatpush1.msra.mxu0 0.0
    %565 = vmatprep.subr.mxu0 0.0
    %566 = vmatpush1.msra.mxu0 0.0
    %567 = vmatprep.subr.mxu0 0.0
    %568 = vmatpush1.msra.mxu0 0.0
    %569 = vmatprep.subr.mxu0 0.0
    %570 = vmatpush1.msra.mxu0 0.0
    %571 = vmatprep.subr.mxu0 0.0
    %572 = vmatpush1.msra.mxu0 0.0
    %573 = vmatprep.subr.mxu0 0.0
    %574 = vmatpush1.msra.mxu0 0.0
    %575 = vmatprep.subr.mxu0 0.0
    %576 = vmatpush1.msra.mxu0 0.0
    %577 = vmatprep.subr.mxu0 0.0
    %578 = vmatpush1.msra.mxu0 0.0
    %579 = vmatprep.subr.mxu0 0.0
    %580 = vmatpush1.msra.mxu0 0.0
    %581 = vmatprep.subr.mxu0 0.0
    %582 = vmatpush1.msra.mxu0 0.0
    %583 = vmatprep.subr.mxu0 0.0
    %584 = vmatpush1.msra.mxu0 0.0
    %585 = vmatprep.subr.mxu0 0.0
    %586 = vmatpush1.msra.mxu0 0.0
    %587 = vmatprep.subr.mxu0 0.0
    %588 = vmatpush1.msra.mxu0 0.0
    %589 = vmatprep.subr.mxu0 0.0
    %590 = vmatpush1.msra.mxu0 0.0
    %591 = vmatprep.subr.mxu0 0.0
    %592 = vmatpush1.msra.mxu0 0.0
    %593 = vmatprep.subr.mxu0 0.0
    %594 = vmatpush1.msra.mxu0 0.0
    %595 = vmatprep.subr.mxu0 0.0
    %596 = vmatpush1.msra.mxu0 0.0
    %597 = vmatprep.subr.mxu0 0.0
    %598 = vmatpush1.msra.mxu0 0.0
    %599 = vmatprep.subr.mxu0 0.0
    %600 = vmatpush1.msra.mxu0 0.0
    %601 = vmatprep.subr.mxu0 0.0
    %602 = vmatpush1.msra.mxu0 0.0
    %603 = vmatprep.subr.mxu0 0.0
    %604 = vmatpush1.msra.mxu0 0.0
    %605 = vmatprep.subr.mxu0 0.0
    %606 = vmatpush1.msra.mxu0 0.0
    %607 = vmatprep.subr.mxu0 0.0
    %608 = vmatpush1.msra.mxu0 0.0
    %609 = vmatprep.subr.mxu0 0.0
    %610 = vmatpush1.msra.mxu0 0.0
    %611 = vmatprep.subr.mxu0 0.0
    %612 = vmatpush1.msra.mxu0 0.0
    %613 = vmatprep.subr.mxu0 0.0
    %614 = vmatpush1.msra.mxu0 0.0
    %615 = vmatprep.mubr.f32.mxu0 0.0
    %616 = vmatmul.mubr.f32.gmra.mrb[0].mxu0 %v540
    %v617 = vpop.f32.mrb[0].mxu0
    %v618 = vadd.f32 %v521, %v617
    %v619 = vpop.f32.mrb[0].mxu0
    %620 = vmatprep.mubr.f32.mxu0 0.0
    %621 = vmatmul.mubr.f32.gmra.mrb[0].mxu0 %v543
    %v622 = vpop.f32.mrb[0].mxu0
    %v623 = vadd.f32 %v526, %v622
    %v624 = vpop.f32.mrb[0].mxu0
    %625 = vmatprep.mubr.f32.mxu0 0.0
    %626 = vmatmul.mubr.f32.gmra.mrb[0].mxu0 %v546
    %v627 = vpop.f32.mrb[0].mxu0
    %v628 = vadd.f32 %v531, %v627
    %v629 = vpop.f32.mrb[0].mxu0
    %630 = vmatprep.mubr.f32.mxu0 0.0
    %631 = vmatmul.mubr.f32.gmra.mrb[0].mxu0 %v549
    %v632 = vpop.f32.mrb[0].mxu0
    %v633 = vadd.f32 %v536, %v632
    %v634 = vpop.f32.mrb[0].mxu0
    %635 = vdwg.mxu0
    %636 = vst [vmem:[#allocation2] sm:$0xff] %v618
    %637 = vst [vmem:[#allocation2 + $0x8] sm:$0xff] %v623
    %638 = vst [vmem:[#allocation2 + $0x10] sm:$0xff] %v628
    %639 = vst [vmem:[#allocation2 + $0x18] sm:$0xff] %v633
    // Predicated region
    $region30: #{tpu_custom_call.1} parent=1 // pred_check
      _
    $region31: #{tpu_custom_call.1} parent=1 // pred_check_branch
      %641 = sbr.rel (0) target = $region33
    $region32: #{tpu_custom_call.1} parent=1 // pred_region
      %s643 = ssub.s32 512, 512
      %644 = vsyncadd [#allocation3], %s643
      %s645 = sshll.u32 [#allocation2], 4
      %s646 = int_to_ptr.vmem [resolvable:$true] %s645
      %651 = dma.vmem_to_hbm [thread:$0]  %s646, 512, %s7, [#allocation3], 128, 128, 8
    $region33: #{tpu_custom_call.1} parent=1 // pred_fallthru
      _
    // Predicated region
    $region34: #{tpu_custom_call.1} parent=1 // pred_check
      _
    $region35: #{tpu_custom_call.1} parent=1 // pred_check_branch
      %653 = sbr.rel (0) target = $region37
    $region36: #{tpu_custom_call.1} parent=1 // pred_region
      %654 = dma.done [#allocation3], 512
    $region37: #{tpu_custom_call.1} parent=1 // pred_fallthru
      _
    %655 = vsyncpa [#allocation3], 1

</llo_original>
